<compile_context>
chip_gen: v6e
topology: v6e:2x2x1
jax: 0.10.0
libtpu: 0.0.40
codegen_flags: <defaults>
</compile_context>

<pallas_src>
import jax
import jax.numpy as jnp
from jax.experimental import pallas as pl
from jax.experimental.pallas import tpu as pltpu

D_MODEL = 64
N_HEAD = 8
D_K = D_MODEL // N_HEAD        # 8  -- MultiHeadAttention(8, 64) head dims
D_V = D_MODEL // N_HEAD        # 8
D_FUSED = 2 * D_MODEL          # subj | obj halves fused on the lane axis -> 128
LN_EPS = 1e-5                  # torch.nn.LayerNorm default
_HI = jax.lax.Precision.HIGHEST


# ----------------------------- kernels --------------------------------------


def _branch_kernel(x_ref, w1_ref, wc_ref, bias_ref, a_ref, yt_ref):
    """Fused subj+obj branch for one row tile.

    Lanes 0:64 carry the subj branch, lanes 64:128 the obj branch.  The whole
    post-ReLU projection chain (second Linear, seq-len-1 attention value/fc
    path and the residual) was folded into one block-diagonal matmul in the
    wrapper; the per-half LayerNorm uses lane-masked reductions so the tile
    stays 128-lane dense.

    Outputs are the two score-stage operands (no selection matmul needed later):
      a_ref  (tb, 128): subj half in lanes 0:64, zeros elsewhere.
      yt_ref (128, tb): obj half rolled into lanes 0:64 (zeros elsewhere),
                        transposed -> plain MXU RHS for the score matmul.
    """
    x = x_ref[...]
    b1 = bias_ref[0:1, :]
    bc = bias_ref[1:2, :]
    gamma = bias_ref[2:3, :]
    beta = bias_ref[3:4, :]

    h = jnp.maximum(
        jnp.dot(x, w1_ref[...], preferred_element_type=jnp.float32) + b1, 0.0)
    s = jnp.dot(h, wc_ref[...], preferred_element_type=jnp.float32) + bc

    # Per-half (64-feature) LayerNorm via lane-masked reductions.
    lane = jax.lax.broadcasted_iota(jnp.int32, s.shape, 1)
    is_subj = lane < D_MODEL

    def half_mean(v):
        subj = jnp.sum(jnp.where(is_subj, v, 0.0), axis=-1, keepdims=True)
        obj = jnp.sum(jnp.where(is_subj, 0.0, v), axis=-1, keepdims=True)
        return jnp.where(is_subj, subj, obj) * (1.0 / D_MODEL)

    mean = half_mean(s)
    cen = s - mean
    var = half_mean(cen * cen)
    y = cen * jax.lax.rsqrt(var + LN_EPS) * gamma + beta    # rsqrt -> EUP slot

    # Score-stage operands (roll/mask/transpose use XLU/VPU slots idle here).
    a = jnp.where(is_subj, y, 0.0)                                   # subj half
    yo = jnp.where(is_subj, pltpu.roll(y, shift=D_MODEL, axis=1), 0.0)  # obj half
    a_ref[...] = a.astype(a_ref.dtype)
    yt_ref[...] = yo.T.astype(yt_ref.dtype)


def _score_kernel(a_ref, yt_ref, out_ref):
    """out = sigmoid(a @ yt) for one (tm, tn) output tile.

    a carries the subj half in lanes 0:64 (zeros elsewhere), yt carries the obj
    half in rows 0:64 (zeros elsewhere), so a single 128-contraction MXU matmul
    computes subj_i . obj_j exactly.  The stage is HBM-write bound.
    """
    s = jnp.dot(a_ref[...], yt_ref[...], preferred_element_type=jnp.float32)
    out_ref[...] = jax.nn.sigmoid(s).astype(out_ref.dtype)


# ----------------------------- sizing helpers --------------------------------


def _round_up(n, m):
    return (n + m - 1) // m * m


def _divisor_tile(n_pad, desired, unit=128):
    """Largest multiple of `unit` that divides n_pad and is <= max(desired, unit)."""
    k = n_pad // unit
    cap = max(int(desired) // unit, 1)
    best = 1
    d = 1
    while d * d <= k:
        if k % d == 0:
            if d <= cap:
                best = max(best, d)
            if k // d <= cap:
                best = max(best, k // d)
        d += 1
    return best * unit


def _vmem_cap_bytes():
    # Generation-aware: v5e/v6e have 128 MiB VMEM per TensorCore, v7x only 64.
    # Fall back to the smallest (v7x) figure if the query is unavailable.
    try:
        return int(pltpu.get_tpu_info().vmem_capacity_bytes)
    except Exception:
        return 64 * 1024 * 1024


def _compiler_params(semantics, live_bytes, vmem_cap):
    # Tiles are sized against ~35% of physical VMEM, so 1.5x the live estimate
    # (double buffering already counted) + headroom stays under the 85% cap,
    # leaving room for Mosaic internal scratch on every generation.
    limit = int(min(max(int(1.5 * live_bytes) + (8 << 20), 32 << 20),
                    int(0.85 * vmem_cap)))
    return pltpu.CompilerParams(dimension_semantics=semantics,
                                vmem_limit_bytes=limit)


# ----------------------------- pallas_call wrappers ---------------------------


def _branch_forward(x_pad, w1f, wcf, biasf, tb, act_dtype, vmem_cap):
    n_pad, dim = x_pad.shape
    xb = jnp.dtype(x_pad.dtype).itemsize
    ab = jnp.dtype(act_dtype).itemsize
    live = (2 * tb * dim * xb                      # x tile (double buffered)
            + 2 * dim * D_FUSED * xb               # w1f
            + 2 * D_FUSED * D_FUSED * 4            # wcf
            + 2 * 8 * D_FUSED * 4                  # biasf
            + 4 * tb * D_FUSED * ab                # a + yt outputs (double buffered)
            + 8 * tb * D_FUSED * 4)                # f32 in-kernel temporaries
    return pl.pallas_call(
        _branch_kernel,
        out_shape=(jax.ShapeDtypeStruct((n_pad, D_FUSED), act_dtype),
                   jax.ShapeDtypeStruct((D_FUSED, n_pad), act_dtype)),
        grid=(n_pad // tb,),
        in_specs=[
            pl.BlockSpec((tb, dim), lambda i: (i, 0)),
            pl.BlockSpec((dim, D_FUSED), lambda i: (0, 0)),
            pl.BlockSpec((D_FUSED, D_FUSED), lambda i: (0, 0)),
            pl.BlockSpec((8, D_FUSED), lambda i: (0, 0)),
        ],
        out_specs=(
            pl.BlockSpec((tb, D_FUSED), lambda i: (i, 0)),
            pl.BlockSpec((D_FUSED, tb), lambda i: (0, i)),
        ),
        compiler_params=_compiler_params(("parallel",), live, vmem_cap),
    )(x_pad, w1f, wcf, biasf)


def _score_forward(a, yt, tm, tn, out_dtype, vmem_cap):
    n_pad = a.shape[0]
    ab = jnp.dtype(a.dtype).itemsize
    ob = jnp.dtype(out_dtype).itemsize
    live = (2 * tm * D_FUSED * ab                  # subj strip
            + 2 * D_FUSED * tn * ab                # resident Y^T column block
            + 2 * tm * tn * ob                     # output strip (double buffered)
            + tm * tn * 4)                         # f32 matmul/sigmoid temp
    return pl.pallas_call(
        _score_kernel,
        out_shape=jax.ShapeDtypeStruct((n_pad, n_pad), out_dtype),
        grid=(n_pad // tm, n_pad // tn),
        in_specs=[
            pl.BlockSpec((tm, D_FUSED), lambda i, j: (i, 0)),
            pl.BlockSpec((D_FUSED, tn), lambda i, j: (0, j)),
        ],
        out_specs=pl.BlockSpec((tm, tn), lambda i, j: (i, j)),
        compiler_params=_compiler_params(("parallel", "parallel"), live, vmem_cap),
    )(a, yt)


# ----------------------------- weight folding / packing ----------------------


def _fold_branch(p):
    """Exact algebra:  branch(x) = LN( relu(x@w1 + b1) @ wc + bc ; gamma, beta )

    with  wvfc = wv @ wfc           (seq-len-1 attention value/fc pair)
          wc   = w2 @ (wvfc + I)    (second proj Linear + residual folded in)
          bc   = b2 @ (wvfc + I) + bv @ wfc + bfc
    """
    wvfc = jnp.dot(p["wv"], p["wfc"], precision=_HI)
    a = wvfc + jnp.eye(D_MODEL, dtype=jnp.float32)
    wc = jnp.dot(p["w2"], a, precision=_HI)
    bc = (jnp.dot(p["b2"], a, precision=_HI)
          + jnp.dot(p["bv"], p["wfc"], precision=_HI) + p["bfc"])
    return p["w1"], p["b1"], wc, bc, p["gamma"], p["beta"]


def _pack_params(params):
    w1s, b1s, wcs, bcs, gs, bts = _fold_branch(params["subj"])
    w1o, b1o, wco, bco, go, bto = _fold_branch(params["obj"])
    w1f = jnp.concatenate([w1s, w1o], axis=1)                      # (D, 128)
    zero = jnp.zeros((D_MODEL, D_MODEL), jnp.float32)
    wcf = jnp.block([[wcs, zero], [zero, wco]])                    # (128, 128) block-diag
    biasf = jnp.concatenate([
        jnp.concatenate([b1s, b1o], axis=1),
        jnp.concatenate([bcs, bco], axis=1),
        jnp.concatenate([gs, go], axis=1),
        jnp.concatenate([bts, bto], axis=1),
        jnp.zeros((4, D_FUSED), jnp.float32),                      # pad to 8 sublanes
    ], axis=0)                                                     # (8, 128)
    return w1f, wcf, biasf


# ----------------------------- public forward --------------------------------


def relationshipness_v2(x, params, *, branch_tile=512, score_tile=256,
                        act_dtype=jnp.bfloat16, out_dtype=jnp.float32):
    """(N, D) proposal features -> (N, N) relationshipness matrix.

    The branch stage reads x in the caller's dtype (pass bf16 features to halve
    the dominant x DMA at large D).  The score stage writes row strips whose
    column width defaults to the full padded N whenever it fits VMEM, so the
    obj operand (Y^T) is VMEM-resident and the grid is just N/tm steps.
    act_dtype: dtype of the score-matmul operands (bf16 = MXU-native default).
    out_dtype: dtype of the (N, N) scores; f32 matches the torch module, bf16
    is the recommended perf path (the stage is HBM-write bound, esp. on v5e).
    Tile sizes and vmem_limit_bytes are derived from the device's physical
    VMEM (v5e/v6e 128 MiB, v7x 64 MiB), keeping >=2 parallel grid steps when
    possible so both v7x TensorCores get work.
    """
    if not jnp.issubdtype(x.dtype, jnp.floating):
        x = x.astype(jnp.float32)
    n, dim = x.shape
    n_pad = _round_up(n, 128)
    vmem_cap = _vmem_cap_bytes()
    budget = int(0.35 * vmem_cap)

    xb = jnp.dtype(x.dtype).itemsize
    ab = jnp.dtype(act_dtype).itemsize
    ob = jnp.dtype(out_dtype).itemsize
    half = n_pad // 2 if n_pad >= 256 else n_pad   # prefer >=2 steps (v7x has 2 TCs)

    # Branch row tile: largest divisor of n_pad that fits the VMEM budget.
    const_b = 2 * dim * D_FUSED * xb + 2 * D_FUSED * D_FUSED * 4 + 2 * 8 * D_FUSED * 4
    per_row = 2 * dim * xb + 4 * D_FUSED * ab + 8 * D_FUSED * 4
    fit_rows = max(128, (budget - const_b) // max(per_row, 1))
    tb = _divisor_tile(n_pad, min(branch_tile, fit_rows, half))

    # Score row strip + widest column tile that fits (ideally the full width).
    tm = _divisor_tile(n_pad, min(score_tile, half))
    col_cost = tm * (2 * ob + 4) + 2 * D_FUSED * ab
    fit_cols = max(128, (budget - 2 * tm * D_FUSED * ab) // max(col_cost, 1))
    tn = _divisor_tile(n_pad, fit_cols)

    w1f, wcf, biasf = _pack_params(params)
    # Pad only to a multiple of 128 (skipped entirely when already aligned).
    x_pad = x if n_pad == n else jnp.pad(x, ((0, n_pad - n), (0, 0)))

    a, yt = _branch_forward(x_pad, w1f.astype(x.dtype), wcf, biasf,
                            tb, act_dtype, vmem_cap)
    scores = _score_forward(a, yt, tm, tn, out_dtype, vmem_cap)
    return scores[:n, :n]


# ----------------------------- params / reference ----------------------------


def _init_linear(key, fan_in, fan_out):
    kw, kb = jax.random.split(key)
    w = jax.random.normal(kw, (fan_in, fan_out), jnp.float32) / jnp.sqrt(float(fan_in))
    b = jax.random.normal(kb, (1, fan_out), jnp.float32) * 0.01
    return w, b


def _init_branch(key, dim):
    k1, k2, kq, kk, kv, kfc = jax.random.split(key, 6)
    w1, b1 = _init_linear(k1, dim, D_MODEL)
    w2, b2 = _init_linear(k2, D_MODEL, D_MODEL)
    # w_qs / w_ks: parameter-shape parity with __init__; with a length-1
    # sequence the attention softmax is identically 1, so they are dead here.
    wq, bq = _init_linear(kq, D_MODEL, N_HEAD * D_K)
    wk, bk = _init_linear(kk, D_MODEL, N_HEAD * D_K)
    wv, bv = _init_linear(kv, D_MODEL, N_HEAD * D_V)
    wfc, bfc = _init_linear(kfc, N_HEAD * D_V, D_MODEL)
    return dict(w1=w1, b1=b1, w2=w2, b2=b2,
                wq=wq, bq=bq, wk=wk, bk=bk, wv=wv, bv=bv,
                wfc=wfc, bfc=bfc,
                gamma=jnp.ones((1, D_MODEL), jnp.float32),
                beta=jnp.zeros((1, D_MODEL), jnp.float32))


def init_params(key, dim):
    ks, ko = jax.random.split(key)
    return {"subj": _init_branch(ks, dim), "obj": _init_branch(ko, dim)}


def reference(x, params):
    """Pure-JAX reference of the same forward (unfused / unfolded)."""
    def branch(p):
        h = jnp.maximum(jnp.dot(x, p["w1"], precision=_HI) + p["b1"], 0.0)
        h = jnp.dot(h, p["w2"], precision=_HI) + p["b2"]
        v = jnp.dot(h, p["wv"], precision=_HI) + p["bv"]   # seq-len-1 attn == value proj
        o = jnp.dot(v, p["wfc"], precision=_HI) + p["bfc"]
        s = o + h
        mu = s.mean(-1, keepdims=True)
        var = ((s - mu) ** 2).mean(-1, keepdims=True)
        return (s - mu) / jnp.sqrt(var + LN_EPS) * p["gamma"] + p["beta"]
    xs, xo = branch(params["subj"]), branch(params["obj"])
    return jax.nn.sigmoid(jnp.dot(xs, xo.T, precision=_HI))


# ----------------------------- main ------------------------------------------


if __name__ == "__main__":
    N, DIM = 16, 32                     # N proposals, input feature dim
    key = jax.random.PRNGKey(0)
    kx, kp = jax.random.split(key)
    x = jax.random.normal(kx, (N, DIM), jnp.float32)
    params = init_params(kp, DIM)

    ref = reference(x, params)

    # f32-activation path: tight check of the fused / folded kernel algebra.
    rel_f32 = jax.block_until_ready(
        relationshipness_v2(x, params, act_dtype=jnp.float32))
    assert rel_f32.shape == (N, N) and rel_f32.dtype == jnp.float32
    assert jnp.allclose(rel_f32, ref, atol=2e-3, rtol=2e-3), "f32 path mismatch"

    # Default perf path: bf16 score-matmul operands, f32 scores.
    relness = jax.block_until_ready(relationshipness_v2(x, params))
    assert relness.shape == (N, N) and relness.dtype == jnp.float32
    assert jnp.allclose(relness, ref, atol=3e-2, rtol=3e-2), "bf16 path mismatch"

    # bf16 scores (recommended when downstream tolerates it, esp. on v5e).
    rel_b16 = jax.block_until_ready(
        relationshipness_v2(x, params, out_dtype=jnp.bfloat16))
    assert rel_b16.shape == (N, N) and rel_b16.dtype == jnp.bfloat16
    assert jnp.allclose(rel_b16.astype(jnp.float32), ref, atol=4e-2, rtol=4e-2), \
        "bf16 score mismatch"

    # bf16 input features: exercises the caller-dtype DMA / bf16 first matmul
    # path (numerics are inherently looser, so only check it runs finite).
    rel_bx = jax.block_until_ready(
        relationshipness_v2(x.astype(jnp.bfloat16), params))
    assert rel_bx.shape == (N, N) and bool(jnp.all(jnp.isfinite(rel_bx)))

    print("KERNEL_OK")
</pallas_src>

<mosaic_0001>
module attributes {stable_mosaic.version = 11 : i64} {
  func.func @_branch_kernel(%arg0: i32, %arg1: memref<128x32xf32, #tpu.memory_space<vmem>>, %arg2: memref<32x128xf32, #tpu.memory_space<vmem>>, %arg3: memref<128x128xf32, #tpu.memory_space<vmem>>, %arg4: memref<8x128xf32, #tpu.memory_space<vmem>>, %arg5: memref<128x128xf32, #tpu.memory_space<vmem>>, %arg6: memref<128x128xf32, #tpu.memory_space<vmem>>) attributes {dimension_semantics = [#tpu.dimension_semantics<parallel>], iteration_bounds = array<i64: 1>, scalar_prefetch = 0 : i64, scratch_operands = 0 : i64, tpu.core_type = #tpu.core_type<tc>, window_params = [{transform_indices = @transform_0, window_bounds = array<i64: 128, 32>}, {pipeline_mode = #tpu.pipeline_mode<synchronous>, transform_indices = @transform_1, window_bounds = array<i64: 32, 128>}, {pipeline_mode = #tpu.pipeline_mode<synchronous>, transform_indices = @transform_2, window_bounds = array<i64: 128, 128>}, {pipeline_mode = #tpu.pipeline_mode<synchronous>, transform_indices = @transform_3, window_bounds = array<i64: 8, 128>}, {transform_indices = @transform_4, window_bounds = array<i64: 128, 128>}, {transform_indices = @transform_5, window_bounds = array<i64: 128, 128>}]} {
    %c0 = arith.constant 0 : index
    %c0_0 = arith.constant 0 : index
    %0 = vector.load %arg1[%c0, %c0_0] : memref<128x32xf32, #tpu.memory_space<vmem>>, vector<128x32xf32>
    %c0_1 = arith.constant 0 : index
    %c0_2 = arith.constant 0 : index
    %1 = vector.load %arg4[%c0_1, %c0_2] : memref<8x128xf32, #tpu.memory_space<vmem>>, vector<1x128xf32>
    %c1 = arith.constant 1 : index
    %c0_3 = arith.constant 0 : index
    %2 = vector.load %arg4[%c1, %c0_3] : memref<8x128xf32, #tpu.memory_space<vmem>>, vector<1x128xf32>
    %c2 = arith.constant 2 : index
    %c0_4 = arith.constant 0 : index
    %3 = vector.load %arg4[%c2, %c0_4] : memref<8x128xf32, #tpu.memory_space<vmem>>, vector<1x128xf32>
    %c3 = arith.constant 3 : index
    %c0_5 = arith.constant 0 : index
    %4 = vector.load %arg4[%c3, %c0_5] : memref<8x128xf32, #tpu.memory_space<vmem>>, vector<1x128xf32>
    %c0_6 = arith.constant 0 : index
    %c0_7 = arith.constant 0 : index
    %5 = vector.load %arg2[%c0_6, %c0_7] : memref<32x128xf32, #tpu.memory_space<vmem>>, vector<32x128xf32>
    %cst = arith.constant dense<0.000000e+00> : vector<128x128xf32>
    %6 = tpu.matmul %0, %5, %cst {dimension_numbers = #tpu.dot_dimension_numbers<[1], [0], [0], [1], [0, 0, 1, 1], [], []>} : vector<128x32xf32>, vector<32x128xf32>, vector<128x128xf32> -> vector<128x128xf32>
    %7 = vector.broadcast %1 : vector<1x128xf32> to vector<128x128xf32>
    %8 = arith.addf %6, %7 : vector<128x128xf32>
    %cst_8 = arith.constant 0.000000e+00 : f32
    %9 = vector.broadcast %cst_8 : f32 to vector<128x128xf32>
    %10 = arith.maximumf %8, %9 : vector<128x128xf32>
    %c0_9 = arith.constant 0 : index
    %c0_10 = arith.constant 0 : index
    %11 = vector.load %arg3[%c0_9, %c0_10] : memref<128x128xf32, #tpu.memory_space<vmem>>, vector<128x128xf32>
    %cst_11 = arith.constant dense<0.000000e+00> : vector<128x128xf32>
    %12 = tpu.matmul %10, %11, %cst_11 {dimension_numbers = #tpu.dot_dimension_numbers<[1], [0], [0], [1], [0, 0, 1, 1], [], []>} : vector<128x128xf32>, vector<128x128xf32>, vector<128x128xf32> -> vector<128x128xf32>
    %13 = vector.broadcast %2 : vector<1x128xf32> to vector<128x128xf32>
    %14 = arith.addf %12, %13 : vector<128x128xf32>
    %15 = tpu.iota {dimensions = array<i32: 1>} : vector<128x128xi32>
    %c64_i32 = arith.constant 64 : i32
    %16 = vector.broadcast %c64_i32 : i32 to vector<128x128xi32>
    %17 = arith.cmpi slt, %15, %16 : vector<128x128xi32>
    %cst_12 = arith.constant 0.000000e+00 : f32
    %18 = vector.broadcast %cst_12 : f32 to vector<128x128xf32>
    %19 = arith.select %17, %14, %18 : vector<128x128xi1>, vector<128x128xf32>
    %cst_13 = arith.constant dense<0.000000e+00> : vector<128xf32>
    %20 = vector.multi_reduction <add>, %19, %cst_13 [1] : vector<128x128xf32> to vector<128xf32>
    %21 = vector.shape_cast %20 : vector<128xf32> to vector<128x1xf32>
    %cst_14 = arith.constant 0.000000e+00 : f32
    %22 = vector.broadcast %cst_14 : f32 to vector<128x128xf32>
    %23 = arith.select %17, %22, %14 : vector<128x128xi1>, vector<128x128xf32>
    %cst_15 = arith.constant dense<0.000000e+00> : vector<128xf32>
    %24 = vector.multi_reduction <add>, %23, %cst_15 [1] : vector<128x128xf32> to vector<128xf32>
    %25 = vector.shape_cast %24 : vector<128xf32> to vector<128x1xf32>
    %26 = vector.shape_cast %21 : vector<128x1xf32> to vector<128x1xf32>
    %27 = vector.broadcast %26 : vector<128x1xf32> to vector<128x128xf32>
    %28 = vector.shape_cast %25 : vector<128x1xf32> to vector<128x1xf32>
    %29 = vector.broadcast %28 : vector<128x1xf32> to vector<128x128xf32>
    %30 = arith.select %17, %27, %29 : vector<128x128xi1>, vector<128x128xf32>
    %cst_16 = arith.constant 1.562500e-02 : f32
    %31 = vector.broadcast %cst_16 : f32 to vector<128x128xf32>
    %32 = arith.mulf %30, %31 : vector<128x128xf32>
    %33 = arith.subf %14, %32 : vector<128x128xf32>
    %34 = arith.mulf %33, %33 : vector<128x128xf32>
    %cst_17 = arith.constant 0.000000e+00 : f32
    %35 = vector.broadcast %cst_17 : f32 to vector<128x128xf32>
    %36 = arith.select %17, %34, %35 : vector<128x128xi1>, vector<128x128xf32>
    %cst_18 = arith.constant dense<0.000000e+00> : vector<128xf32>
    %37 = vector.multi_reduction <add>, %36, %cst_18 [1] : vector<128x128xf32> to vector<128xf32>
    %38 = vector.shape_cast %37 : vector<128xf32> to vector<128x1xf32>
    %cst_19 = arith.constant 0.000000e+00 : f32
    %39 = vector.broadcast %cst_19 : f32 to vector<128x128xf32>
    %40 = arith.select %17, %39, %34 : vector<128x128xi1>, vector<128x128xf32>
    %cst_20 = arith.constant dense<0.000000e+00> : vector<128xf32>
    %41 = vector.multi_reduction <add>, %40, %cst_20 [1] : vector<128x128xf32> to vector<128xf32>
    %42 = vector.shape_cast %41 : vector<128xf32> to vector<128x1xf32>
    %43 = vector.shape_cast %38 : vector<128x1xf32> to vector<128x1xf32>
    %44 = vector.broadcast %43 : vector<128x1xf32> to vector<128x128xf32>
    %45 = vector.shape_cast %42 : vector<128x1xf32> to vector<128x1xf32>
    %46 = vector.broadcast %45 : vector<128x1xf32> to vector<128x128xf32>
    %47 = arith.select %17, %44, %46 : vector<128x128xi1>, vector<128x128xf32>
    %cst_21 = arith.constant 1.562500e-02 : f32
    %48 = vector.broadcast %cst_21 : f32 to vector<128x128xf32>
    %49 = arith.mulf %47, %48 : vector<128x128xf32>
    %cst_22 = arith.constant 9.99999974E-6 : f32
    %50 = vector.broadcast %cst_22 : f32 to vector<128x128xf32>
    %51 = arith.addf %49, %50 : vector<128x128xf32>
    %52 = math.rsqrt %51 : vector<128x128xf32>
    %53 = arith.mulf %33, %52 : vector<128x128xf32>
    %54 = vector.broadcast %3 : vector<1x128xf32> to vector<128x128xf32>
    %55 = arith.mulf %53, %54 : vector<128x128xf32>
    %56 = vector.broadcast %4 : vector<1x128xf32> to vector<128x128xf32>
    %57 = arith.addf %55, %56 : vector<128x128xf32>
    %cst_23 = arith.constant 0.000000e+00 : f32
    %58 = vector.broadcast %cst_23 : f32 to vector<128x128xf32>
    %59 = arith.select %17, %57, %58 : vector<128x128xi1>, vector<128x128xf32>
    %c64_i32_24 = arith.constant 64 : i32
    %60 = tpu.dynamic_rotate %57 by %c64_i32_24 dim 1 : vector<128x128xf32>, i32 -> vector<128x128xf32>
    %cst_25 = arith.constant 0.000000e+00 : f32
    %61 = vector.broadcast %cst_25 : f32 to vector<128x128xf32>
    %62 = arith.select %17, %60, %61 : vector<128x128xi1>, vector<128x128xf32>
    %c0_26 = arith.constant 0 : index
    %c0_27 = arith.constant 0 : index
    %63 = vector.load %arg5[%c0_26, %c0_27] : memref<128x128xf32, #tpu.memory_space<vmem>>, vector<128x128xf32>
    tpu.vector_store %arg5[%c0_26, %c0_27], %59 {strides = array<i32>} : memref<128x128xf32, #tpu.memory_space<vmem>>, vector<128x128xf32>,
    %64 = tpu.transpose %62, [1, 0] : vector<128x128xf32> -> vector<128x128xf32>
    %c0_28 = arith.constant 0 : index
    %c0_29 = arith.constant 0 : index
    %65 = vector.load %arg6[%c0_28, %c0_29] : memref<128x128xf32, #tpu.memory_space<vmem>>, vector<128x128xf32>
    tpu.vector_store %arg6[%c0_28, %c0_29], %64 {strides = array<i32>} : memref<128x128xf32, #tpu.memory_space<vmem>>, vector<128x128xf32>,
    return
  }
  func.func @transform_0(%arg0: i32) -> (i32, i32) {
    %c0_i32 = arith.constant 0 : i32
    %c0_i32_0 = arith.constant 0 : i32
    return %arg0, %c0_i32 : i32, i32
  }
  func.func @transform_1(%arg0: i32) -> (i32, i32) {
    %c0_i32 = arith.constant 0 : i32
    %c0_i32_0 = arith.constant 0 : i32
    %c0_i32_1 = arith.constant 0 : i32
    return %c0_i32, %c0_i32_0 : i32, i32
  }
  func.func @transform_2(%arg0: i32) -> (i32, i32) {
    %c0_i32 = arith.constant 0 : i32
    %c0_i32_0 = arith.constant 0 : i32
    %c0_i32_1 = arith.constant 0 : i32
    return %c0_i32, %c0_i32_0 : i32, i32
  }
  func.func @transform_3(%arg0: i32) -> (i32, i32) {
    %c0_i32 = arith.constant 0 : i32
    %c0_i32_0 = arith.constant 0 : i32
    %c0_i32_1 = arith.constant 0 : i32
    return %c0_i32, %c0_i32_0 : i32, i32
  }
  func.func @transform_4(%arg0: i32) -> (i32, i32) {
    %c0_i32 = arith.constant 0 : i32
    %c0_i32_0 = arith.constant 0 : i32
    return %arg0, %c0_i32 : i32, i32
  }
  func.func @transform_5(%arg0: i32) -> (i32, i32) {
    %c0_i32 = arith.constant 0 : i32
    %c0_i32_0 = arith.constant 0 : i32
    return %c0_i32, %arg0 : i32, i32
  }
}

</mosaic_0001>

<llo_original>
// kernel: tpu_custom_call.1
$region0: #{tpu_custom_call.1}
  #allocation0 [shape = 'u32[]', space=smem, size = 0x4, offset = 0x4, fixed_abs, tag = 'smem constant byte address 0x4 - core index']
  #allocation1 [shape = 'u32[144,128]{1,0:T(1,128)}', space=vmem, size = 0x12000, scoped, tag = 'internal scratch']
  %s0 = inlined_call_operand.vmem [shape: f32[128,32], index: 0, kind: input, shape index: {}]
  %s1 = inlined_call_operand.vmem [shape: f32[32,128], index: 1, kind: input, shape index: {}]
  %s2 = inlined_call_operand.vmem [shape: f32[128,128], index: 2, kind: input, shape index: {}]
  %s3 = inlined_call_operand.hbm [shape: f32[8,128], index: 3, kind: input, shape index: {}]
  %s4 = inlined_call_operand.hbm [shape: f32[128,128], index: 4, kind: output, shape index: {0}]
  %s5 = inlined_call_operand.hbm [shape: f32[128,128], index: 5, kind: output, shape index: {1}]
  %6 = xla_tuple %s4, %s5
  %s7 = sld [smem:[#allocation0]]
  $region38: #{tpu_custom_call.1} parent=0
    _
  %s9 = ssub.s32 1, %s7
  %s10 = scalar_select 0, %s9, %s7
  $region1: #{tpu_custom_call.1} parent=0
    #allocation2 [shape = 'u8[4096]{0}', space=vmem, size = 0x1000, scoped, tag = 'input window, operand 3, single buffered']
    #allocation3 [shape = 's32[1]{0}', space=sflag, size = 0x4, scoped, tag = 'scoped memory for tpu_custom_call.1']
    #allocation4 [shape = 's32[1]{0}', space=sflag, size = 0x4, scoped, tag = 'scoped memory for tpu_custom_call.1']
    #allocation5 [shape = 'u8[65536]{0}', space=vmem, size = 0x10000, scoped, tag = 'output window, operand 0, single buffered']
    #allocation6 [shape = 'u8[65536]{0}', space=vmem, size = 0x10000, scoped, tag = 'output window, operand 1, single buffered']
    #allocation7 [shape = 's32[1]{0}', space=sflag, size = 0x4, scoped, tag = 'scoped memory for tpu_custom_call.1']
    %11 = vsyncpa [#allocation3], 0
    %12 = vsyncpa [#allocation4], 0
    %13 = vsyncpa [#allocation7], 0
    // Predicated region
    $region2: #{tpu_custom_call.1} parent=1 // pred_check
      _
    $region3: #{tpu_custom_call.1} parent=1 // pred_check_branch
      %15 = sbr.rel (0) target = $region5
    $region4: #{tpu_custom_call.1} parent=1 // pred_region
      _
    $region5: #{tpu_custom_call.1} parent=1 // pred_fallthru
      _
    // Predicated region
    $region6: #{tpu_custom_call.1} parent=1 // pred_check
      _
    $region7: #{tpu_custom_call.1} parent=1 // pred_check_branch
      %17 = sbr.rel (0) target = $region9
    $region8: #{tpu_custom_call.1} parent=1 // pred_region
      _
    $region9: #{tpu_custom_call.1} parent=1 // pred_fallthru
      _
    // Predicated region
    $region10: #{tpu_custom_call.1} parent=1 // pred_check
      _
    $region11: #{tpu_custom_call.1} parent=1 // pred_check_branch
      %19 = sbr.rel (0) target = $region13
    $region12: #{tpu_custom_call.1} parent=1 // pred_region
      _
    $region13: #{tpu_custom_call.1} parent=1 // pred_fallthru
      _
    // Predicated region
    $region14: #{tpu_custom_call.1} parent=1 // pred_check
      _
    $region15: #{tpu_custom_call.1} parent=1 // pred_check_branch
      %21 = sbr.rel (0) target = $region17
    $region16: #{tpu_custom_call.1} parent=1 // pred_region
      %s23 = ssub.s32 128, 128
      %24 = vsyncadd [#allocation3], %s23
      %s26 = sshll.u32 [#allocation2], 4
      %s27 = int_to_ptr.vmem [resolvable:$true] %s26
      %29 = dma.hbm_to_vmem [thread:$0]  %s3, 128, %s27, [#allocation3]
    $region17: #{tpu_custom_call.1} parent=1 // pred_fallthru
      _
    // Predicated region
    $region18: #{tpu_custom_call.1} parent=1 // pred_check
      _
    $region19: #{tpu_custom_call.1} parent=1 // pred_check_branch
      %31 = sbr.rel (0) target = $region21
    $region20: #{tpu_custom_call.1} parent=1 // pred_region
      %32 = dma.done [#allocation3], 128
    $region21: #{tpu_custom_call.1} parent=1 // pred_fallthru
      _
    %v33 = vld [vmem:[%s0] sm:$0xff]
    %v34 = vld [vmem:[%s0 + $0x8] sm:$0xff]
    %v35 = vld [vmem:[%s0 + $0x10] sm:$0xff]
    %v36 = vld [vmem:[%s0 + $0x18] sm:$0xff]
    %v37 = vld [vmem:[%s0 + $0x20] sm:$0xff]
    %v38 = vld [vmem:[%s0 + $0x28] sm:$0xff]
    %v39 = vld [vmem:[%s0 + $0x30] sm:$0xff]
    %v40 = vld [vmem:[%s0 + $0x38] sm:$0xff]
    %v41 = vld [vmem:[%s0 + $0x40] sm:$0xff]
    %v42 = vld [vmem:[%s0 + $0x48] sm:$0xff]
    %v43 = vld [vmem:[%s0 + $0x50] sm:$0xff]
    %v44 = vld [vmem:[%s0 + $0x58] sm:$0xff]
    %v45 = vld [vmem:[%s0 + $0x60] sm:$0xff]
    %v46 = vld [vmem:[%s0 + $0x68] sm:$0xff]
    %v47 = vld [vmem:[%s0 + $0x70] sm:$0xff]
    %v48 = vld [vmem:[%s0 + $0x78] sm:$0xff]
    %v49 = vld [vmem:[#allocation2] sm:$0x1]
    %v50 = vld [vmem:[#allocation2 + $0x1] sm:$0x1]
    %v51 = vld [vmem:[#allocation2 + $0x2] sm:$0x1]
    %v52 = vld [vmem:[#allocation2 + $0x3] sm:$0x1]
    %v53 = vld [vmem:[%s1] sm:$0xff]
    %v54 = vld [vmem:[%s1 + $0x8] sm:$0xff]
    %v55 = vld [vmem:[%s1 + $0x10] sm:$0xff]
    %v56 = vld [vmem:[%s1 + $0x18] sm:$0xff]
    %v57 = vlaneseq
    %v58 = vshrl.u32 %v57, 7
    %v59 = vsub.s32 0, %v58
    %v60 = vrot.slane %v49, %v59
    %vm61 = vcmask 261120
    %v63 = vsel %vm61, %v33, 0
    %v66 = vsel %vm61, %v34, 0
    %v69 = vsel %vm61, %v35, 0
    %v72 = vsel %vm61, %v36, 0
    %v75 = vsel %vm61, %v37, 0
    %v78 = vsel %vm61, %v38, 0
    %v81 = vsel %vm61, %v39, 0
    %v84 = vsel %vm61, %v40, 0
    %v87 = vsel %vm61, %v41, 0
    %v90 = vsel %vm61, %v42, 0
    %v93 = vsel %vm61, %v43, 0
    %v96 = vsel %vm61, %v44, 0
    %v99 = vsel %vm61, %v45, 0
    %v102 = vsel %vm61, %v46, 0
    %v105 = vsel %vm61, %v47, 0
    %v108 = vsel %vm61, %v48, 0
    %110 = vmatprep.subr.mxu0 0.0
    %111 = vmatpush1.msra.mxu0 0.0
    %112 = vmatprep.subr.mxu0 0.0
    %113 = vmatpush1.msra.mxu0 0.0
    %114 = vmatprep.subr.mxu0 0.0
    %115 = vmatpush1.msra.mxu0 0.0
    %116 = vmatprep.subr.mxu0 0.0
    %117 = vmatpush1.msra.mxu0 0.0
    %118 = vmatprep.subr.mxu0 0.0
    %119 = vmatpush1.msra.mxu0 0.0
    %120 = vmatprep.subr.mxu0 0.0
    %121 = vmatpush1.msra.mxu0 0.0
    %122 = vmatprep.subr.mxu0 0.0
    %123 = vmatpush1.msra.mxu0 0.0
    %124 = vmatprep.subr.mxu0 0.0
    %125 = vmatpush1.msra.mxu0 0.0
    %126 = vmatprep.subr.mxu0 0.0
    %127 = vmatpush1.msra.mxu0 0.0
    %128 = vmatprep.subr.mxu0 0.0
    %129 = vmatpush1.msra.mxu0 0.0
    %130 = vmatprep.subr.mxu0 0.0
    %131 = vmatpush1.msra.mxu0 0.0
    %132 = vmatprep.subr.mxu0 0.0
    %133 = vmatpush1.msra.mxu0 0.0
    %134 = vmatprep.subr.mxu0 0.0
    %135 = vmatpush1.msra.mxu0 %v56
    %136 = vmatprep.subr.mxu0 0.0
    %137 = vmatpush1.msra.mxu0 %v55
    %138 = vmatprep.subr.mxu0 0.0
    %139 = vmatpush1.msra.mxu0 %v54
    %140 = vmatprep.subr.mxu0 0.0
    %141 = vmatpush1.msra.mxu0 %v53
    %142 = vmatprep.subr.mxu0 0.0
    %143 = vmatpush2.msra.mxu0 0.0
    %144 = vmatprep.subr.mxu0 0.0
    %145 = vmatpush2.msra.mxu0 0.0
    %146 = vmatprep.subr.mxu0 0.0
    %147 = vmatpush2.msra.mxu0 0.0
    %148 = vmatprep.subr.mxu0 0.0
    %149 = vmatpush2.msra.mxu0 0.0
    %150 = vmatprep.subr.mxu0 0.0
    %151 = vmatpush2.msra.mxu0 0.0
    %152 = vmatprep.subr.mxu0 0.0
    %153 = vmatpush2.msra.mxu0 0.0
    %154 = vmatprep.subr.mxu0 0.0
    %155 = vmatpush2.msra.mxu0 0.0
    %156 = vmatprep.subr.mxu0 0.0
    %157 = vmatpush2.msra.mxu0 0.0
    %158 = vmatprep.subr.mxu0 0.0
    %159 = vmatpush2.msra.mxu0 0.0
    %160 = vmatprep.subr.mxu0 0.0
    %161 = vmatpush2.msra.mxu0 0.0
    %162 = vmatprep.subr.mxu0 0.0
    %163 = vmatpush2.msra.mxu0 0.0
    %164 = vmatprep.subr.mxu0 0.0
    %165 = vmatpush2.msra.mxu0 0.0
    %166 = vmatprep.subr.mxu0 0.0
    %167 = vmatpush2.msra.mxu0 0.0
    %168 = vmatprep.subr.mxu0 0.0
    %169 = vmatpush2.msra.mxu0 0.0
    %170 = vmatprep.subr.mxu0 0.0
    %171 = vmatpush2.msra.mxu0 0.0
    %172 = vmatprep.subr.mxu0 0.0
    %173 = vmatpush2.msra.mxu0 0.0
    %174 = vmatprep.mubr.f32.mxu0 0.0
    %175 = vmatmul.mubr.f32.gmra.mxu0 %v63
    %v176 = vpop.f32.mrf.mxu0
    %v177 = vadd.f32 %v60, %v176
    %v178 = vpop.f32.mrf.mxu0
    %179 = vmatprep.mubr.f32.mxu0 0.0
    %180 = vmatmul.mubr.f32.gmra.mxu0 %v66
    %v181 = vpop.f32.mrf.mxu0
    %v182 = vadd.f32 %v60, %v181
    %v183 = vpop.f32.mrf.mxu0
    %184 = vmatprep.mubr.f32.mxu0 0.0
    %185 = vmatmul.mubr.f32.gmra.mxu0 %v69
    %v186 = vpop.f32.mrf.mxu0
    %v187 = vadd.f32 %v60, %v186
    %v188 = vpop.f32.mrf.mxu0
    %189 = vmatprep.mubr.f32.mxu0 0.0
    %190 = vmatmul.mubr.f32.gmra.mxu0 %v72
    %v191 = vpop.f32.mrf.mxu0
    %v192 = vadd.f32 %v60, %v191
    %v193 = vpop.f32.mrf.mxu0
    %194 = vmatprep.mubr.f32.mxu0 0.0
    %195 = vmatmul.mubr.f32.gmra.mxu0 %v75
    %v196 = vpop.f32.mrf.mxu0
    %v197 = vadd.f32 %v60, %v196
    %v198 = vpop.f32.mrf.mxu0
    %199 = vmatprep.mubr.f32.mxu0 0.0
    %200 = vmatmul.mubr.f32.gmra.mxu0 %v78
    %v201 = vpop.f32.mrf.mxu0
    %v202 = vadd.f32 %v60, %v201
    %v203 = vpop.f32.mrf.mxu0
    %204 = vmatprep.mubr.f32.mxu0 0.0
    %205 = vmatmul.mubr.f32.gmra.mxu0 %v81
    %v206 = vpop.f32.mrf.mxu0
    %v207 = vadd.f32 %v60, %v206
    %v208 = vpop.f32.mrf.mxu0
    %209 = vmatprep.mubr.f32.mxu0 0.0
    %210 = vmatmul.mubr.f32.gmra.mxu0 %v84
    %v211 = vpop.f32.mrf.mxu0
    %v212 = vadd.f32 %v60, %v211
    %v213 = vpop.f32.mrf.mxu0
    %214 = vmatprep.mubr.f32.mxu0 0.0
    %215 = vmatmul.mubr.f32.gmra.mxu0 %v87
    %v216 = vpop.f32.mrf.mxu0
    %v217 = vadd.f32 %v60, %v216
    %v218 = vpop.f32.mrf.mxu0
    %219 = vmatprep.mubr.f32.mxu0 0.0
    %220 = vmatmul.mubr.f32.gmra.mxu0 %v90
    %v221 = vpop.f32.mrf.mxu0
    %v222 = vadd.f32 %v60, %v221
    %v223 = vpop.f32.mrf.mxu0
    %224 = vmatprep.mubr.f32.mxu0 0.0
    %225 = vmatmul.mubr.f32.gmra.mxu0 %v93
    %v226 = vpop.f32.mrf.mxu0
    %v227 = vadd.f32 %v60, %v226
    %v228 = vpop.f32.mrf.mxu0
    %229 = vmatprep.mubr.f32.mxu0 0.0
    %230 = vmatmul.mubr.f32.gmra.mxu0 %v96
    %v231 = vpop.f32.mrf.mxu0
    %v232 = vadd.f32 %v60, %v231
    %v233 = vpop.f32.mrf.mxu0
    %234 = vmatprep.mubr.f32.mxu0 0.0
    %235 = vmatmul.mubr.f32.gmra.mxu0 %v99
    %v236 = vpop.f32.mrf.mxu0
    %v237 = vadd.f32 %v60, %v236
    %v238 = vpop.f32.mrf.mxu0
    %239 = vmatprep.mubr.f32.mxu0 0.0
    %240 = vmatmul.mubr.f32.gmra.mxu0 %v102
    %v241 = vpop.f32.mrf.mxu0
    %v242 = vadd.f32 %v60, %v241
    %v243 = vpop.f32.mrf.mxu0
    %244 = vmatprep.mubr.f32.mxu0 0.0
    %245 = vmatmul.mubr.f32.gmra.mxu0 %v105
    %v246 = vpop.f32.mrf.mxu0
    %v247 = vadd.f32 %v60, %v246
    %v248 = vpop.f32.mrf.mxu0
    %249 = vmatprep.mubr.f32.mxu0 0.0
    %250 = vmatmul.mubr.f32.gmra.mxu0 %v108
    %v251 = vpop.f32.mrf.mxu0
    %v252 = vadd.f32 %v60, %v251
    %v253 = vpop.f32.mrf.mxu0
    %254 = vdwg.mxu0
    %v255 = vmax.f32 %v177, 0.0
    %v256 = vmax.f32 %v182, 0.0
    %v257 = vmax.f32 %v187, 0.0
    %v258 = vmax.f32 %v192, 0.0
    %v259 = vmax.f32 %v197, 0.0
    %v260 = vmax.f32 %v202, 0.0
    %v261 = vmax.f32 %v207, 0.0
    %v262 = vmax.f32 %v212, 0.0
    %v263 = vmax.f32 %v217, 0.0
    %v264 = vmax.f32 %v222, 0.0
    %v265 = vmax.f32 %v227, 0.0
    %v266 = vmax.f32 %v232, 0.0
    %v267 = vmax.f32 %v237, 0.0
    %v268 = vmax.f32 %v242, 0.0
    %v269 = vmax.f32 %v247, 0.0
    %v270 = vmax.f32 %v252, 0.0
    %v271 = vld [vmem:[%s2] sm:$0xff]
    %v272 = vld [vmem:[%s2 + $0x8] sm:$0xff]
    %v273 = vld [vmem:[%s2 + $0x10] sm:$0xff]
    %v274 = vld [vmem:[%s2 + $0x18] sm:$0xff]
    %v275 = vld [vmem:[%s2 + $0x20] sm:$0xff]
    %v276 = vld [vmem:[%s2 + $0x28] sm:$0xff]
    %v277 = vld [vmem:[%s2 + $0x30] sm:$0xff]
    %v278 = vld [vmem:[%s2 + $0x38] sm:$0xff]
    %v279 = vld [vmem:[%s2 + $0x40] sm:$0xff]
    %v280 = vld [vmem:[%s2 + $0x48] sm:$0xff]
    %v281 = vld [vmem:[%s2 + $0x50] sm:$0xff]
    %v282 = vld [vmem:[%s2 + $0x58] sm:$0xff]
    %v283 = vld [vmem:[%s2 + $0x60] sm:$0xff]
    %v284 = vld [vmem:[%s2 + $0x68] sm:$0xff]
    %v285 = vld [vmem:[%s2 + $0x70] sm:$0xff]
    %v286 = vld [vmem:[%s2 + $0x78] sm:$0xff]
    %v287 = vlaneseq
    %v288 = vshrl.u32 %v287, 7
    %v289 = vsub.s32 0, %v288
    %v290 = vrot.slane %v50, %v289
    %291 = vmatprep.subr.mxu0 0.0
    %292 = vmatpush1.msra.mxu0 %v286
    %293 = vmatprep.subr.mxu0 0.0
    %294 = vmatpush1.msra.mxu0 %v285
    %295 = vmatprep.subr.mxu0 0.0
    %296 = vmatpush1.msra.mxu0 %v284
    %297 = vmatprep.subr.mxu0 0.0
    %298 = vmatpush1.msra.mxu0 %v283
    %299 = vmatprep.subr.mxu0 0.0
    %300 = vmatpush1.msra.mxu0 %v282
    %301 = vmatprep.subr.mxu0 0.0
    %302 = vmatpush1.msra.mxu0 %v281
    %303 = vmatprep.subr.mxu0 0.0
    %304 = vmatpush1.msra.mxu0 %v280
    %305 = vmatprep.subr.mxu0 0.0
    %306 = vmatpush1.msra.mxu0 %v279
    %307 = vmatprep.subr.mxu0 0.0
    %308 = vmatpush1.msra.mxu0 %v278
    %309 = vmatprep.subr.mxu0 0.0
    %310 = vmatpush1.msra.mxu0 %v277
    %311 = vmatprep.subr.mxu0 0.0
    %312 = vmatpush1.msra.mxu0 %v276
    %313 = vmatprep.subr.mxu0 0.0
    %314 = vmatpush1.msra.mxu0 %v275
    %315 = vmatprep.subr.mxu0 0.0
    %316 = vmatpush1.msra.mxu0 %v274
    %317 = vmatprep.subr.mxu0 0.0
    %318 = vmatpush1.msra.mxu0 %v273
    %319 = vmatprep.subr.mxu0 0.0
    %320 = vmatpush1.msra.mxu0 %v272
    %321 = vmatprep.subr.mxu0 0.0
    %322 = vmatpush1.msra.mxu0 %v271
    %323 = vmatprep.subr.mxu0 0.0
    %324 = vmatpush2.msra.mxu0 0.0
    %325 = vmatprep.subr.mxu0 0.0
    %326 = vmatpush2.msra.mxu0 0.0
    %327 = vmatprep.subr.mxu0 0.0
    %328 = vmatpush2.msra.mxu0 0.0
    %329 = vmatprep.subr.mxu0 0.0
    %330 = vmatpush2.msra.mxu0 0.0
    %331 = vmatprep.subr.mxu0 0.0
    %332 = vmatpush2.msra.mxu0 0.0
    %333 = vmatprep.subr.mxu0 0.0
    %334 = vmatpush2.msra.mxu0 0.0
    %335 = vmatprep.subr.mxu0 0.0
    %336 = vmatpush2.msra.mxu0 0.0
    %337 = vmatprep.subr.mxu0 0.0
    %338 = vmatpush2.msra.mxu0 0.0
    %339 = vmatprep.subr.mxu0 0.0
    %340 = vmatpush2.msra.mxu0 0.0
    %341 = vmatprep.subr.mxu0 0.0
    %342 = vmatpush2.msra.mxu0 0.0
    %343 = vmatprep.subr.mxu0 0.0
    %344 = vmatpush2.msra.mxu0 0.0
    %345 = vmatprep.subr.mxu0 0.0
    %346 = vmatpush2.msra.mxu0 0.0
    %347 = vmatprep.subr.mxu0 0.0
    %348 = vmatpush2.msra.mxu0 0.0
    %349 = vmatprep.subr.mxu0 0.0
    %350 = vmatpush2.msra.mxu0 0.0
    %351 = vmatprep.subr.mxu0 0.0
    %352 = vmatpush2.msra.mxu0 0.0
    %353 = vmatprep.subr.mxu0 0.0
    %354 = vmatpush2.msra.mxu0 0.0
    %355 = vmatprep.mubr.f32.mxu0 0.0
    %356 = vmatmul.mubr.f32.gmra.mxu0 %v255
    %v357 = vpop.f32.mrf.mxu0
    %v358 = vadd.f32 %v290, %v357
    %v359 = vpop.f32.mrf.mxu0
    %360 = vmatprep.mubr.f32.mxu0 0.0
    %361 = vmatmul.mubr.f32.gmra.mxu0 %v256
    %v362 = vpop.f32.mrf.mxu0
    %v363 = vadd.f32 %v290, %v362
    %v364 = vpop.f32.mrf.mxu0
    %365 = vmatprep.mubr.f32.mxu0 0.0
    %366 = vmatmul.mubr.f32.gmra.mxu0 %v257
    %v367 = vpop.f32.mrf.mxu0
    %v368 = vadd.f32 %v290, %v367
    %v369 = vpop.f32.mrf.mxu0
    %370 = vmatprep.mubr.f32.mxu0 0.0
    %371 = vmatmul.mubr.f32.gmra.mxu0 %v258
    %v372 = vpop.f32.mrf.mxu0
    %v373 = vadd.f32 %v290, %v372
    %v374 = vpop.f32.mrf.mxu0
    %375 = vmatprep.mubr.f32.mxu0 0.0
    %376 = vmatmul.mubr.f32.gmra.mxu0 %v259
    %v377 = vpop.f32.mrf.mxu0
    %v378 = vadd.f32 %v290, %v377
    %v379 = vpop.f32.mrf.mxu0
    %380 = vmatprep.mubr.f32.mxu0 0.0
    %381 = vmatmul.mubr.f32.gmra.mxu0 %v260
    %v382 = vpop.f32.mrf.mxu0
    %v383 = vadd.f32 %v290, %v382
    %v384 = vpop.f32.mrf.mxu0
    %385 = vmatprep.mubr.f32.mxu0 0.0
    %386 = vmatmul.mubr.f32.gmra.mxu0 %v261
    %v387 = vpop.f32.mrf.mxu0
    %v388 = vadd.f32 %v290, %v387
    %v389 = vpop.f32.mrf.mxu0
    %390 = vmatprep.mubr.f32.mxu0 0.0
    %391 = vmatmul.mubr.f32.gmra.mxu0 %v262
    %v392 = vpop.f32.mrf.mxu0
    %v393 = vadd.f32 %v290, %v392
    %v394 = vpop.f32.mrf.mxu0
    %395 = vmatprep.mubr.f32.mxu0 0.0
    %396 = vmatmul.mubr.f32.gmra.mxu0 %v263
    %v397 = vpop.f32.mrf.mxu0
    %v398 = vadd.f32 %v290, %v397
    %v399 = vpop.f32.mrf.mxu0
    %400 = vmatprep.mubr.f32.mxu0 0.0
    %401 = vmatmul.mubr.f32.gmra.mxu0 %v264
    %v402 = vpop.f32.mrf.mxu0
    %v403 = vadd.f32 %v290, %v402
    %v404 = vpop.f32.mrf.mxu0
    %405 = vmatprep.mubr.f32.mxu0 0.0
    %406 = vmatmul.mubr.f32.gmra.mxu0 %v265
    %v407 = vpop.f32.mrf.mxu0
    %v408 = vadd.f32 %v290, %v407
    %v409 = vpop.f32.mrf.mxu0
    %410 = vmatprep.mubr.f32.mxu0 0.0
    %411 = vmatmul.mubr.f32.gmra.mxu0 %v266
    %v412 = vpop.f32.mrf.mxu0
    %v413 = vadd.f32 %v290, %v412
    %v414 = vpop.f32.mrf.mxu0
    %415 = vmatprep.mubr.f32.mxu0 0.0
    %416 = vmatmul.mubr.f32.gmra.mxu0 %v267
    %v417 = vpop.f32.mrf.mxu0
    %v418 = vadd.f32 %v290, %v417
    %v419 = vpop.f32.mrf.mxu0
    %420 = vmatprep.mubr.f32.mxu0 0.0
    %421 = vmatmul.mubr.f32.gmra.mxu0 %v268
    %v422 = vpop.f32.mrf.mxu0
    %v423 = vadd.f32 %v290, %v422
    %v424 = vpop.f32.mrf.mxu0
    %425 = vmatprep.mubr.f32.mxu0 0.0
    %426 = vmatmul.mubr.f32.gmra.mxu0 %v269
    %v427 = vpop.f32.mrf.mxu0
    %v428 = vadd.f32 %v290, %v427
    %v429 = vpop.f32.mrf.mxu0
    %430 = vmatprep.mubr.f32.mxu0 0.0
    %431 = vmatmul.mubr.f32.gmra.mxu0 %v270
    %v432 = vpop.f32.mrf.mxu0
    %v433 = vadd.f32 %v290, %v432
    %v434 = vpop.f32.mrf.mxu0
    %435 = vdwg.mxu0
    %v436 = vlaneseq
    %v437 = vand.u32 %v436, 127
    %vm438 = vcmp.lt.s32.totalorder %v437, 64
    %v439 = vsel %vm438, %v358, 0.0
    %v440 = vsel %vm438, %v363, 0.0
    %v441 = vsel %vm438, %v368, 0.0
    %v442 = vsel %vm438, %v373, 0.0
    %v443 = vsel %vm438, %v378, 0.0
    %v444 = vsel %vm438, %v383, 0.0
    %v445 = vsel %vm438, %v388, 0.0
    %v446 = vsel %vm438, %v393, 0.0
    %v447 = vsel %vm438, %v398, 0.0
    %v448 = vsel %vm438, %v403, 0.0
    %v449 = vsel %vm438, %v408, 0.0
    %v450 = vsel %vm438, %v413, 0.0
    %v451 = vsel %vm438, %v418, 0.0
    %v452 = vsel %vm438, %v423, 0.0
    %v453 = vsel %vm438, %v428, 0.0
    %v454 = vsel %vm438, %v433, 0.0
    %455 = vadd.xlane.f32.xlu0 %v439
    %v456 = vpop.xlane.xlu0 %455
    %457 = vadd.xlane.f32.xlu0 %v440
    %v458 = vpop.xlane.xlu0 %457
    %459 = vadd.xlane.f32.xlu0 %v441
    %v460 = vpop.xlane.xlu0 %459
    %461 = vadd.xlane.f32.xlu0 %v442
    %v462 = vpop.xlane.xlu0 %461
    %463 = vadd.xlane.f32.xlu0 %v443
    %v464 = vpop.xlane.xlu0 %463
    %465 = vadd.xlane.f32.xlu0 %v444
    %v466 = vpop.xlane.xlu0 %465
    %467 = vadd.xlane.f32.xlu0 %v445
    %v468 = vpop.xlane.xlu0 %467
    %469 = vadd.xlane.f32.xlu0 %v446
    %v470 = vpop.xlane.xlu0 %469
    %471 = vadd.xlane.f32.xlu0 %v447
    %v472 = vpop.xlane.xlu0 %471
    %473 = vadd.xlane.f32.xlu0 %v448
    %v474 = vpop.xlane.xlu0 %473
    %475 = vadd.xlane.f32.xlu0 %v449
    %v476 = vpop.xlane.xlu0 %475
    %477 = vadd.xlane.f32.xlu0 %v450
    %v478 = vpop.xlane.xlu0 %477
    %479 = vadd.xlane.f32.xlu0 %v451
    %v480 = vpop.xlane.xlu0 %479
    %481 = vadd.xlane.f32.xlu0 %v452
    %v482 = vpop.xlane.xlu0 %481
    %483 = vadd.xlane.f32.xlu0 %v453
    %v484 = vpop.xlane.xlu0 %483
    %485 = vadd.xlane.f32.xlu0 %v454
    %v486 = vpop.xlane.xlu0 %485
    %v487 = vsel %vm438, 0.0, %v358
    %v488 = vsel %vm438, 0.0, %v363
    %v489 = vsel %vm438, 0.0, %v368
    %v490 = vsel %vm438, 0.0, %v373
    %v491 = vsel %vm438, 0.0, %v378
    %v492 = vsel %vm438, 0.0, %v383
    %v493 = vsel %vm438, 0.0, %v388
    %v494 = vsel %vm438, 0.0, %v393
    %v495 = vsel %vm438, 0.0, %v398
    %v496 = vsel %vm438, 0.0, %v403
    %v497 = vsel %vm438, 0.0, %v408
    %v498 = vsel %vm438, 0.0, %v413
    %v499 = vsel %vm438, 0.0, %v418
    %v500 = vsel %vm438, 0.0, %v423
    %v501 = vsel %vm438, 0.0, %v428
    %v502 = vsel %vm438, 0.0, %v433
    %503 = vadd.xlane.f32.xlu0 %v487
    %v504 = vpop.xlane.xlu0 %503
    %505 = vadd.xlane.f32.xlu0 %v488
    %v506 = vpop.xlane.xlu0 %505
    %507 = vadd.xlane.f32.xlu0 %v489
    %v508 = vpop.xlane.xlu0 %507
    %509 = vadd.xlane.f32.xlu0 %v490
    %v510 = vpop.xlane.xlu0 %509
    %511 = vadd.xlane.f32.xlu0 %v491
    %v512 = vpop.xlane.xlu0 %511
    %513 = vadd.xlane.f32.xlu0 %v492
    %v514 = vpop.xlane.xlu0 %513
    %515 = vadd.xlane.f32.xlu0 %v493
    %v516 = vpop.xlane.xlu0 %515
    %517 = vadd.xlane.f32.xlu0 %v494
    %v518 = vpop.xlane.xlu0 %517
    %519 = vadd.xlane.f32.xlu0 %v495
    %v520 = vpop.xlane.xlu0 %519
    %521 = vadd.xlane.f32.xlu0 %v496
    %v522 = vpop.xlane.xlu0 %521
    %523 = vadd.xlane.f32.xlu0 %v497
    %v524 = vpop.xlane.xlu0 %523
    %525 = vadd.xlane.f32.xlu0 %v498
    %v526 = vpop.xlane.xlu0 %525
    %527 = vadd.xlane.f32.xlu0 %v499
    %v528 = vpop.xlane.xlu0 %527
    %529 = vadd.xlane.f32.xlu0 %v500
    %v530 = vpop.xlane.xlu0 %529
    %531 = vadd.xlane.f32.xlu0 %v501
    %v532 = vpop.xlane.xlu0 %531
    %533 = vadd.xlane.f32.xlu0 %v502
    %v534 = vpop.xlane.xlu0 %533
    %v535 = vsel %vm438, %v456, %v504
    %v536 = vsel %vm438, %v458, %v506
    %v537 = vsel %vm438, %v460, %v508
    %v538 = vsel %vm438, %v462, %v510
    %v539 = vsel %vm438, %v464, %v512
    %v540 = vsel %vm438, %v466, %v514
    %v541 = vsel %vm438, %v468, %v516
    %v542 = vsel %vm438, %v470, %v518
    %v543 = vsel %vm438, %v472, %v520
    %v544 = vsel %vm438, %v474, %v522
    %v545 = vsel %vm438, %v476, %v524
    %v546 = vsel %vm438, %v478, %v526
    %v547 = vsel %vm438, %v480, %v528
    %v548 = vsel %vm438, %v482, %v530
    %v549 = vsel %vm438, %v484, %v532
    %v550 = vsel %vm438, %v486, %v534
    %v551 = vmul.f32 %v535, 0.015625
    %v552 = vmul.f32 %v536, 0.015625
    %v553 = vmul.f32 %v537, 0.015625
    %v554 = vmul.f32 %v538, 0.015625
    %v555 = vmul.f32 %v539, 0.015625
    %v556 = vmul.f32 %v540, 0.015625
    %v557 = vmul.f32 %v541, 0.015625
    %v558 = vmul.f32 %v542, 0.015625
    %v559 = vmul.f32 %v543, 0.015625
    %v560 = vmul.f32 %v544, 0.015625
    %v561 = vmul.f32 %v545, 0.015625
    %v562 = vmul.f32 %v546, 0.015625
    %v563 = vmul.f32 %v547, 0.015625
    %v564 = vmul.f32 %v548, 0.015625
    %v565 = vmul.f32 %v549, 0.015625
    %v566 = vmul.f32 %v550, 0.015625
    %v567 = vsub.f32 %v358, %v551
    %v568 = vsub.f32 %v363, %v552
    %v569 = vsub.f32 %v368, %v553
    %v570 = vsub.f32 %v373, %v554
    %v571 = vsub.f32 %v378, %v555
    %v572 = vsub.f32 %v383, %v556
    %v573 = vsub.f32 %v388, %v557
    %v574 = vsub.f32 %v393, %v558
    %v575 = vsub.f32 %v398, %v559
    %v576 = vsub.f32 %v403, %v560
    %v577 = vsub.f32 %v408, %v561
    %v578 = vsub.f32 %v413, %v562
    %v579 = vsub.f32 %v418, %v563
    %v580 = vsub.f32 %v423, %v564
    %v581 = vsub.f32 %v428, %v565
    %v582 = vsub.f32 %v433, %v566
    %v583 = vmul.f32 %v567, %v567
    %v584 = vmul.f32 %v568, %v568
    %v585 = vmul.f32 %v569, %v569
    %v586 = vmul.f32 %v570, %v570
    %v587 = vmul.f32 %v571, %v571
    %v588 = vmul.f32 %v572, %v572
    %v589 = vmul.f32 %v573, %v573
    %v590 = vmul.f32 %v574, %v574
    %v591 = vmul.f32 %v575, %v575
    %v592 = vmul.f32 %v576, %v576
    %v593 = vmul.f32 %v577, %v577
    %v594 = vmul.f32 %v578, %v578
    %v595 = vmul.f32 %v579, %v579
    %v596 = vmul.f32 %v580, %v580
    %v597 = vmul.f32 %v581, %v581
    %v598 = vmul.f32 %v582, %v582
    %v599 = vsel %vm438, %v583, 0.0
    %v600 = vsel %vm438, %v584, 0.0
    %v601 = vsel %vm438, %v585, 0.0
    %v602 = vsel %vm438, %v586, 0.0
    %v603 = vsel %vm438, %v587, 0.0
    %v604 = vsel %vm438, %v588, 0.0
    %v605 = vsel %vm438, %v589, 0.0
    %v606 = vsel %vm438, %v590, 0.0
    %v607 = vsel %vm438, %v591, 0.0
    %v608 = vsel %vm438, %v592, 0.0
    %v609 = vsel %vm438, %v593, 0.0
    %v610 = vsel %vm438, %v594, 0.0
    %v611 = vsel %vm438, %v595, 0.0
    %v612 = vsel %vm438, %v596, 0.0
    %v613 = vsel %vm438, %v597, 0.0
    %v614 = vsel %vm438, %v598, 0.0
    %615 = vadd.xlane.f32.xlu0 %v599
    %v616 = vpop.xlane.xlu0 %615
    %617 = vadd.xlane.f32.xlu0 %v600
    %v618 = vpop.xlane.xlu0 %617
    %619 = vadd.xlane.f32.xlu0 %v601
    %v620 = vpop.xlane.xlu0 %619
    %621 = vadd.xlane.f32.xlu0 %v602
    %v622 = vpop.xlane.xlu0 %621
    %623 = vadd.xlane.f32.xlu0 %v603
    %v624 = vpop.xlane.xlu0 %623
    %625 = vadd.xlane.f32.xlu0 %v604
    %v626 = vpop.xlane.xlu0 %625
    %627 = vadd.xlane.f32.xlu0 %v605
    %v628 = vpop.xlane.xlu0 %627
    %629 = vadd.xlane.f32.xlu0 %v606
    %v630 = vpop.xlane.xlu0 %629
    %631 = vadd.xlane.f32.xlu0 %v607
    %v632 = vpop.xlane.xlu0 %631
    %633 = vadd.xlane.f32.xlu0 %v608
    %v634 = vpop.xlane.xlu0 %633
    %635 = vadd.xlane.f32.xlu0 %v609
    %v636 = vpop.xlane.xlu0 %635
    %637 = vadd.xlane.f32.xlu0 %v610
    %v638 = vpop.xlane.xlu0 %637
    %639 = vadd.xlane.f32.xlu0 %v611
    %v640 = vpop.xlane.xlu0 %639
    %641 = vadd.xlane.f32.xlu0 %v612
    %v642 = vpop.xlane.xlu0 %641
    %643 = vadd.xlane.f32.xlu0 %v613
    %v644 = vpop.xlane.xlu0 %643
    %645 = vadd.xlane.f32.xlu0 %v614
    %v646 = vpop.xlane.xlu0 %645
    %v647 = vsel %vm438, 0.0, %v583
    %v648 = vsel %vm438, 0.0, %v584
    %v649 = vsel %vm438, 0.0, %v585
    %v650 = vsel %vm438, 0.0, %v586
    %v651 = vsel %vm438, 0.0, %v587
    %v652 = vsel %vm438, 0.0, %v588
    %v653 = vsel %vm438, 0.0, %v589
    %v654 = vsel %vm438, 0.0, %v590
    %v655 = vsel %vm438, 0.0, %v591
    %v656 = vsel %vm438, 0.0, %v592
    %v657 = vsel %vm438, 0.0, %v593
    %v658 = vsel %vm438, 0.0, %v594
    %v659 = vsel %vm438, 0.0, %v595
    %v660 = vsel %vm438, 0.0, %v596
    %v661 = vsel %vm438, 0.0, %v597
    %v662 = vsel %vm438, 0.0, %v598
    %663 = vadd.xlane.f32.xlu0 %v647
    %v664 = vpop.xlane.xlu0 %663
    %665 = vadd.xlane.f32.xlu0 %v648
    %v666 = vpop.xlane.xlu0 %665
    %667 = vadd.xlane.f32.xlu0 %v649
    %v668 = vpop.xlane.xlu0 %667
    %669 = vadd.xlane.f32.xlu0 %v650
    %v670 = vpop.xlane.xlu0 %669
    %671 = vadd.xlane.f32.xlu0 %v651
    %v672 = vpop.xlane.xlu0 %671
    %673 = vadd.xlane.f32.xlu0 %v652
    %v674 = vpop.xlane.xlu0 %673
    %675 = vadd.xlane.f32.xlu0 %v653
    %v676 = vpop.xlane.xlu0 %675
    %677 = vadd.xlane.f32.xlu0 %v654
    %v678 = vpop.xlane.xlu0 %677
    %679 = vadd.xlane.f32.xlu0 %v655
    %v680 = vpop.xlane.xlu0 %679
    %681 = vadd.xlane.f32.xlu0 %v656
    %v682 = vpop.xlane.xlu0 %681
    %683 = vadd.xlane.f32.xlu0 %v657
    %v684 = vpop.xlane.xlu0 %683
    %685 = vadd.xlane.f32.xlu0 %v658
    %v686 = vpop.xlane.xlu0 %685
    %687 = vadd.xlane.f32.xlu0 %v659
    %v688 = vpop.xlane.xlu0 %687
    %689 = vadd.xlane.f32.xlu0 %v660
    %v690 = vpop.xlane.xlu0 %689
    %691 = vadd.xlane.f32.xlu0 %v661
    %v692 = vpop.xlane.xlu0 %691
    %693 = vadd.xlane.f32.xlu0 %v662
    %v694 = vpop.xlane.xlu0 %693
    %v695 = vsel %vm438, %v616, %v664
    %v696 = vsel %vm438, %v618, %v666
    %v697 = vsel %vm438, %v620, %v668
    %v698 = vsel %vm438, %v622, %v670
    %v699 = vsel %vm438, %v624, %v672
    %v700 = vsel %vm438, %v626, %v674
    %v701 = vsel %vm438, %v628, %v676
    %v702 = vsel %vm438, %v630, %v678
    %v703 = vsel %vm438, %v632, %v680
    %v704 = vsel %vm438, %v634, %v682
    %v705 = vsel %vm438, %v636, %v684
    %v706 = vsel %vm438, %v638, %v686
    %v707 = vsel %vm438, %v640, %v688
    %v708 = vsel %vm438, %v642, %v690
    %v709 = vsel %vm438, %v644, %v692
    %v710 = vsel %vm438, %v646, %v694
    %v711 = vmul.f32 %v695, 0.015625
    %v712 = vmul.f32 %v696, 0.015625
    %v713 = vmul.f32 %v697, 0.015625
    %v714 = vmul.f32 %v698, 0.015625
    %v715 = vmul.f32 %v699, 0.015625
    %v716 = vmul.f32 %v700, 0.015625
    %v717 = vmul.f32 %v701, 0.015625
    %v718 = vmul.f32 %v702, 0.015625
    %v719 = vmul.f32 %v703, 0.015625
    %v720 = vmul.f32 %v704, 0.015625
    %v721 = vmul.f32 %v705, 0.015625
    %v722 = vmul.f32 %v706, 0.015625
    %v723 = vmul.f32 %v707, 0.015625
    %v724 = vmul.f32 %v708, 0.015625
    %v725 = vmul.f32 %v709, 0.015625
    %v726 = vmul.f32 %v710, 0.015625
    %v727 = vadd.f32 %v711, 1e-05
    %v728 = vadd.f32 %v712, 1e-05
    %v729 = vadd.f32 %v713, 1e-05
    %v730 = vadd.f32 %v714, 1e-05
    %v731 = vadd.f32 %v715, 1e-05
    %v732 = vadd.f32 %v716, 1e-05
    %v733 = vadd.f32 %v717, 1e-05
    %v734 = vadd.f32 %v718, 1e-05
    %v735 = vadd.f32 %v719, 1e-05
    %v736 = vadd.f32 %v720, 1e-05
    %v737 = vadd.f32 %v721, 1e-05
    %v738 = vadd.f32 %v722, 1e-05
    %v739 = vadd.f32 %v723, 1e-05
    %v740 = vadd.f32 %v724, 1e-05
    %v741 = vadd.f32 %v725, 1e-05
    %v742 = vadd.f32 %v726, 1e-05
    %v743 = vrsqrt.pop %v727
    %v744 = vrsqrt.pop %v728
    %v745 = vrsqrt.pop %v729
    %v746 = vrsqrt.pop %v730
    %v747 = vrsqrt.pop %v731
    %v748 = vrsqrt.pop %v732
    %v749 = vrsqrt.pop %v733
    %v750 = vrsqrt.pop %v734
    %v751 = vrsqrt.pop %v735
    %v752 = vrsqrt.pop %v736
    %v753 = vrsqrt.pop %v737
    %v754 = vrsqrt.pop %v738
    %v755 = vrsqrt.pop %v739
    %v756 = vrsqrt.pop %v740
    %v757 = vrsqrt.pop %v741
    %v758 = vrsqrt.pop %v742
    %v759 = vmul.f32 %v567, %v743
    %v760 = vmul.f32 %v568, %v744
    %v761 = vmul.f32 %v569, %v745
    %v762 = vmul.f32 %v570, %v746
    %v763 = vmul.f32 %v571, %v747
    %v764 = vmul.f32 %v572, %v748
    %v765 = vmul.f32 %v573, %v749
    %v766 = vmul.f32 %v574, %v750
    %v767 = vmul.f32 %v575, %v751
    %v768 = vmul.f32 %v576, %v752
    %v769 = vmul.f32 %v577, %v753
    %v770 = vmul.f32 %v578, %v754
    %v771 = vmul.f32 %v579, %v755
    %v772 = vmul.f32 %v580, %v756
    %v773 = vmul.f32 %v581, %v757
    %v774 = vmul.f32 %v582, %v758
    %v775 = vlaneseq
    %v776 = vshrl.u32 %v775, 7
    %v777 = vsub.s32 0, %v776
    %v778 = vrot.slane %v51, %v777
    %v779 = vmul.f32 %v759, %v778
    %v780 = vmul.f32 %v760, %v778
    %v781 = vmul.f32 %v761, %v778
    %v782 = vmul.f32 %v762, %v778
    %v783 = vmul.f32 %v763, %v778
    %v784 = vmul.f32 %v764, %v778
    %v785 = vmul.f32 %v765, %v778
    %v786 = vmul.f32 %v766, %v778
    %v787 = vmul.f32 %v767, %v778
    %v788 = vmul.f32 %v768, %v778
    %v789 = vmul.f32 %v769, %v778
    %v790 = vmul.f32 %v770, %v778
    %v791 = vmul.f32 %v771, %v778
    %v792 = vmul.f32 %v772, %v778
    %v793 = vmul.f32 %v773, %v778
    %v794 = vmul.f32 %v774, %v778
    %v795 = vlaneseq
    %v796 = vshrl.u32 %v795, 7
    %v797 = vsub.s32 0, %v796
    %v798 = vrot.slane %v52, %v797
    %v799 = vadd.f32 %v779, %v798
    %v800 = vadd.f32 %v780, %v798
    %v801 = vadd.f32 %v781, %v798
    %v802 = vadd.f32 %v782, %v798
    %v803 = vadd.f32 %v783, %v798
    %v804 = vadd.f32 %v784, %v798
    %v805 = vadd.f32 %v785, %v798
    %v806 = vadd.f32 %v786, %v798
    %v807 = vadd.f32 %v787, %v798
    %v808 = vadd.f32 %v788, %v798
    %v809 = vadd.f32 %v789, %v798
    %v810 = vadd.f32 %v790, %v798
    %v811 = vadd.f32 %v791, %v798
    %v812 = vadd.f32 %v792, %v798
    %v813 = vadd.f32 %v793, %v798
    %v814 = vadd.f32 %v794, %v798
    %v815 = vsel %vm438, %v799, 0.0
    %v816 = vsel %vm438, %v800, 0.0
    %v817 = vsel %vm438, %v801, 0.0
    %v818 = vsel %vm438, %v802, 0.0
    %v819 = vsel %vm438, %v803, 0.0
    %v820 = vsel %vm438, %v804, 0.0
    %v821 = vsel %vm438, %v805, 0.0
    %v822 = vsel %vm438, %v806, 0.0
    %v823 = vsel %vm438, %v807, 0.0
    %v824 = vsel %vm438, %v808, 0.0
    %v825 = vsel %vm438, %v809, 0.0
    %v826 = vsel %vm438, %v810, 0.0
    %v827 = vsel %vm438, %v811, 0.0
    %v828 = vsel %vm438, %v812, 0.0
    %v829 = vsel %vm438, %v813, 0.0
    %v830 = vsel %vm438, %v814, 0.0
    %831 = vrot.lane.b32.xlu0 %v799, 64
    %v832 = vpop.permute.xlu0 %831
    %833 = vrot.lane.b32.xlu0 %v800, 64
    %v834 = vpop.permute.xlu0 %833
    %835 = vrot.lane.b32.xlu0 %v801, 64
    %v836 = vpop.permute.xlu0 %835
    %837 = vrot.lane.b32.xlu0 %v802, 64
    %v838 = vpop.permute.xlu0 %837
    %839 = vrot.lane.b32.xlu0 %v803, 64
    %v840 = vpop.permute.xlu0 %839
    %841 = vrot.lane.b32.xlu0 %v804, 64
    %v842 = vpop.permute.xlu0 %841
    %843 = vrot.lane.b32.xlu0 %v805, 64
    %v844 = vpop.permute.xlu0 %843
    %845 = vrot.lane.b32.xlu0 %v806, 64
    %v846 = vpop.permute.xlu0 %845
    %847 = vrot.lane.b32.xlu0 %v807, 64
    %v848 = vpop.permute.xlu0 %847
    %849 = vrot.lane.b32.xlu0 %v808, 64
    %v850 = vpop.permute.xlu0 %849
    %851 = vrot.lane.b32.xlu0 %v809, 64
    %v852 = vpop.permute.xlu0 %851
    %853 = vrot.lane.b32.xlu0 %v810, 64
    %v854 = vpop.permute.xlu0 %853
    %855 = vrot.lane.b32.xlu0 %v811, 64
    %v856 = vpop.permute.xlu0 %855
    %857 = vrot.lane.b32.xlu0 %v812, 64
    %v858 = vpop.permute.xlu0 %857
    %859 = vrot.lane.b32.xlu0 %v813, 64
    %v860 = vpop.permute.xlu0 %859
    %861 = vrot.lane.b32.xlu0 %v814, 64
    %v862 = vpop.permute.xlu0 %861
    %v863 = vsel %vm438, %v832, 0.0
    %v864 = vsel %vm438, %v834, 0.0
    %v865 = vsel %vm438, %v836, 0.0
    %v866 = vsel %vm438, %v838, 0.0
    %v867 = vsel %vm438, %v840, 0.0
    %v868 = vsel %vm438, %v842, 0.0
    %v869 = vsel %vm438, %v844, 0.0
    %v870 = vsel %vm438, %v846, 0.0
    %v871 = vsel %vm438, %v848, 0.0
    %v872 = vsel %vm438, %v850, 0.0
    %v873 = vsel %vm438, %v852, 0.0
    %v874 = vsel %vm438, %v854, 0.0
    %v875 = vsel %vm438, %v856, 0.0
    %v876 = vsel %vm438, %v858, 0.0
    %v877 = vsel %vm438, %v860, 0.0
    %v878 = vsel %vm438, %v862, 0.0
    %879 = vst [vmem:[#allocation5] sm:$0xff] %v815
    %880 = vst [vmem:[#allocation5 + $0x8] sm:$0xff] %v816
    %881 = vst [vmem:[#allocation5 + $0x10] sm:$0xff] %v817
    %882 = vst [vmem:[#allocation5 + $0x18] sm:$0xff] %v818
    %883 = vst [vmem:[#allocation5 + $0x20] sm:$0xff] %v819
    %884 = vst [vmem:[#allocation5 + $0x28] sm:$0xff] %v820
    %885 = vst [vmem:[#allocation5 + $0x30] sm:$0xff] %v821
    %886 = vst [vmem:[#allocation5 + $0x38] sm:$0xff] %v822
    %887 = vst [vmem:[#allocation5 + $0x40] sm:$0xff] %v823
    %888 = vst [vmem:[#allocation5 + $0x48] sm:$0xff] %v824
    %889 = vst [vmem:[#allocation5 + $0x50] sm:$0xff] %v825
    %890 = vst [vmem:[#allocation5 + $0x58] sm:$0xff] %v826
    %891 = vst [vmem:[#allocation5 + $0x60] sm:$0xff] %v827
    %892 = vst [vmem:[#allocation5 + $0x68] sm:$0xff] %v828
    %893 = vst [vmem:[#allocation5 + $0x70] sm:$0xff] %v829
    %894 = vst [vmem:[#allocation5 + $0x78] sm:$0xff] %v830
    %895 = vxpose.xlu0.b32.start [1/16] %v863, 128
    %896 = vxpose.xlu0.b32.cont [2/16] %v864, 128
    %897 = vxpose.xlu0.b32.cont [3/16] %v865, 128
    %898 = vxpose.xlu0.b32.cont [4/16] %v866, 128
    %899 = vxpose.xlu0.b32.cont [5/16] %v867, 128
    %900 = vxpose.xlu0.b32.cont [6/16] %v868, 128
    %901 = vxpose.xlu0.b32.cont [7/16] %v869, 128
    %902 = vxpose.xlu0.b32.cont [8/16] %v870, 128
    %903 = vxpose.xlu0.b32.cont [9/16] %v871, 128
    %904 = vxpose.xlu0.b32.cont [10/16] %v872, 128
    %905 = vxpose.xlu0.b32.cont [11/16] %v873, 128
    %906 = vxpose.xlu0.b32.cont [12/16] %v874, 128
    %907 = vxpose.xlu0.b32.cont [13/16] %v875, 128
    %908 = vxpose.xlu0.b32.cont [14/16] %v876, 128
    %909 = vxpose.xlu0.b32.cont [15/16] %v877, 128
    %910 = vxpose.xlu0.b32.end [16/16] %v878, 128
    %v911 = vpop.trf.xlu0
    %v912 = vpop.trf.xlu0
    %v913 = vpop.trf.xlu0
    %v914 = vpop.trf.xlu0
    %v915 = vpop.trf.xlu0
    %v916 = vpop.trf.xlu0
    %v917 = vpop.trf.xlu0
    %v918 = vpop.trf.xlu0
    %v919 = vpop.trf.xlu0
    %v920 = vpop.trf.xlu0
    %v921 = vpop.trf.xlu0
    %v922 = vpop.trf.xlu0
    %v923 = vpop.trf.xlu0
    %v924 = vpop.trf.xlu0
    %v925 = vpop.trf.xlu0
    %v926 = vpop.trf.xlu0
    %927 = vst [vmem:[#allocation6] sm:$0xff] %v911
    %928 = vst [vmem:[#allocation6 + $0x8] sm:$0xff] %v912
    %929 = vst [vmem:[#allocation6 + $0x10] sm:$0xff] %v913
    %930 = vst [vmem:[#allocation6 + $0x18] sm:$0xff] %v914
    %931 = vst [vmem:[#allocation6 + $0x20] sm:$0xff] %v915
    %932 = vst [vmem:[#allocation6 + $0x28] sm:$0xff] %v916
    %933 = vst [vmem:[#allocation6 + $0x30] sm:$0xff] %v917
    %934 = vst [vmem:[#allocation6 + $0x38] sm:$0xff] %v918
    %935 = vst [vmem:[#allocation6 + $0x40] sm:$0xff] %v919
    %936 = vst [vmem:[#allocation6 + $0x48] sm:$0xff] %v920
    %937 = vst [vmem:[#allocation6 + $0x50] sm:$0xff] %v921
    %938 = vst [vmem:[#allocation6 + $0x58] sm:$0xff] %v922
    %939 = vst [vmem:[#allocation6 + $0x60] sm:$0xff] %v923
    %940 = vst [vmem:[#allocation6 + $0x68] sm:$0xff] %v924
    %941 = vst [vmem:[#allocation6 + $0x70] sm:$0xff] %v925
    %942 = vst [vmem:[#allocation6 + $0x78] sm:$0xff] %v926
    // Predicated region
    $region22: #{tpu_custom_call.1} parent=1 // pred_check
      _
    $region23: #{tpu_custom_call.1} parent=1 // pred_check_branch
      %944 = sbr.rel (0) target = $region25
    $region24: #{tpu_custom_call.1} parent=1 // pred_region
      %s946 = ssub.s32 2048, 2048
      %947 = vsyncadd [#allocation4], %s946
      %s948 = sshll.u32 [#allocation5], 4
      %s949 = int_to_ptr.vmem [resolvable:$true] %s948
      %954 = dma.vmem_to_hbm [thread:$0]  %s949, 2048, %s4, [#allocation4], 128, 128, 8
    $region25: #{tpu_custom_call.1} parent=1 // pred_fallthru
      _
    // Predicated region
    $region26: #{tpu_custom_call.1} parent=1 // pred_check
      _
    $region27: #{tpu_custom_call.1} parent=1 // pred_check_branch
      %956 = sbr.rel (0) target = $region29
    $region28: #{tpu_custom_call.1} parent=1 // pred_region
      %s958 = ssub.s32 2048, 2048
      %959 = vsyncadd [#allocation7], %s958
      %s960 = sshll.u32 [#allocation6], 4
      %s961 = int_to_ptr.vmem [resolvable:$true] %s960
      %966 = dma.vmem_to_hbm [thread:$0]  %s961, 2048, %s5, [#allocation7], 128, 128, 8
    $region29: #{tpu_custom_call.1} parent=1 // pred_fallthru
      _
    // Predicated region
    $region30: #{tpu_custom_call.1} parent=1 // pred_check
      _
    $region31: #{tpu_custom_call.1} parent=1 // pred_check_branch
      %968 = sbr.rel (0) target = $region33
    $region32: #{tpu_custom_call.1} parent=1 // pred_region
      %969 = dma.done [#allocation4], 2048
    $region33: #{tpu_custom_call.1} parent=1 // pred_fallthru
      _
    // Predicated region
    $region34: #{tpu_custom_call.1} parent=1 // pred_check
      _
    $region35: #{tpu_custom_call.1} parent=1 // pred_check_branch
      %971 = sbr.rel (0) target = $region37
    $region36: #{tpu_custom_call.1} parent=1 // pred_region
      %972 = dma.done [#allocation7], 2048
    $region37: #{tpu_custom_call.1} parent=1 // pred_fallthru
      _
    %973 = vsyncpa [#allocation3], 1
    %974 = vsyncpa [#allocation4], 1
    %975 = vsyncpa [#allocation7], 1

</llo_original>
